<compile_context>
chip_gen: v5e
topology: v5e:2x2
jax: 0.10.0
libtpu: 0.0.40
codegen_flags: <defaults>
</compile_context>

<pallas_src>
import functools
from typing import NamedTuple, Optional, List

import jax
import jax.numpy as jnp
from jax.experimental import pallas as pl
from jax.experimental.pallas import tpu as pltpu


class PersistenceInformation(NamedTuple):
    """Minimal stand-in for torchph's PersistenceInformation."""
    pairing: jnp.ndarray    # (n_pairs, 2) indices (synthetic)
    diagram: jnp.ndarray    # (n_pairs, 2) birth/death values
    dimension: int          # homology dimension of this diagram


_LANES = 128
_MIN_PAD = 32 * _LANES          # 4096: rows >= 32 keeps int8 output natively tiled
_MAX_BLOCK_ROWS = 2048          # 2048 x 128 x 4B = 1 MiB input tile, well under VMEM


# ----------------------------------------------------------------------------
# Pallas kernel: elementwise dimension-range predicate with in-kernel
# out-of-range masking (no sentinel padding needed).
# ----------------------------------------------------------------------------
def _select_mask_kernel(params_ref, dims_ref, mask_ref, *, block_rows: int):
    # SMEM scalars: [n, min_dim, max_dim (or 0), has_max]
    n = params_ref[0]
    lo = params_ref[1]
    hi_raw = params_ref[2]
    has_max = params_ref[3]
    # Scalar select: without max_dim the predicate is d == min_dim, i.e.
    # min_dim <= d <= min_dim. Keeps the vector path to two compares + and.
    hi = jnp.where(has_max != 0, hi_raw, lo)

    d = dims_ref[...]                                   # (block_rows, 128) int32
    r, c = d.shape
    row0 = pl.program_id(0) * block_rows
    row = jax.lax.broadcasted_iota(jnp.int32, (r, c), 0) + row0
    col = jax.lax.broadcasted_iota(jnp.int32, (r, c), 1)
    in_bounds = (row * c + col) < n                     # mask padded lanes

    valid = jnp.logical_and(d >= lo, d <= hi)
    mask_ref[...] = jnp.logical_and(valid, in_bounds).astype(jnp.int8)


@jax.jit
def _select_mask_call(params: jnp.ndarray, dims2d: jnp.ndarray) -> jnp.ndarray:
    rows, cols = dims2d.shape
    block_rows = min(rows, _MAX_BLOCK_ROWS)             # rows is a power of two >= 32
    num_blocks = rows // block_rows
    kernel = functools.partial(_select_mask_kernel, block_rows=block_rows)
    return pl.pallas_call(
        kernel,
        out_shape=jax.ShapeDtypeStruct((rows, cols), jnp.int8),
        grid_spec=pltpu.PrefetchScalarGridSpec(
            num_scalar_prefetch=1,
            grid=(num_blocks,),
            in_specs=[pl.BlockSpec((block_rows, cols), lambda i, params: (i, 0))],
            out_specs=pl.BlockSpec((block_rows, cols), lambda i, params: (i, 0)),
        ),
        compiler_params=pltpu.CompilerParams(
            dimension_semantics=("parallel",)),
    )(params, dims2d)


def select_mask(dims: jnp.ndarray, min_dim: int, max_dim: Optional[int]) -> jnp.ndarray:
    """Per-diagram validity mask computed on TPU.

    Args:
      dims: (num_diagrams,) integer array of diagram dimensions.
      min_dim / max_dim: filter parameters.

    Returns:
      (num_diagrams,) int8 mask (1 = keep, 0 = drop).
    """
    n = int(dims.shape[0])
    # Bucket the padded length to powers of two (>= 32*128) so the jitted
    # pallas_call is compiled once per size bucket, not once per exact n.
    p = max(_MIN_PAD, int(pl.next_power_of_2(n)))
    dims_i32 = jnp.asarray(dims, dtype=jnp.int32)
    dims_padded = jnp.pad(dims_i32, (0, p - n))         # padded values are masked in-kernel
    dims2d = dims_padded.reshape(p // _LANES, _LANES)   # sublane-dense layout

    has_max = 0 if max_dim is None else 1
    max_val = 0 if max_dim is None else int(max_dim)
    params = jnp.array([n, int(min_dim), max_val, has_max], dtype=jnp.int32)

    mask2d = _select_mask_call(params, dims2d)
    return mask2d.reshape(-1)[:n]


# ----------------------------------------------------------------------------
# Module wrapper mirroring the torch API
# ----------------------------------------------------------------------------
class SelectByDimension:
    def __init__(self, min_dim: int, max_dim: Optional[int] = None):
        self.min_dim = min_dim
        self.max_dim = max_dim

    def __call__(self, X: List[PersistenceInformation]) -> List[PersistenceInformation]:
        if len(X) == 0:
            return []
        dims = jnp.asarray([int(pi.dimension) for pi in X], dtype=jnp.int32)
        mask = jax.device_get(select_mask(dims, self.min_dim, self.max_dim))
        # TODO(synk): the variable-length list selection (dynamic output size)
        #             has no static-shape Pallas equivalent; only the predicate
        #             runs on-TPU. Batching several filters' (min,max) ranges
        #             into one launch would amortize this host round trip.
        return [pi for pi, keep in zip(X, mask) if bool(keep)]


# ----------------------------------------------------------------------------
# Demo / self-check
# ----------------------------------------------------------------------------
if __name__ == "__main__":
    key = jax.random.PRNGKey(0)

    # Small synthetic batch of persistence diagrams with mixed dimensions.
    dimensions = [0, 1, 2, 0, 1, 2, 3, 1]          # 8 diagrams
    X = []
    for dim in dimensions:
        key, k1, k2 = jax.random.split(key, 3)
        n_pairs = 4
        diagram = jax.random.uniform(k1, (n_pairs, 2), dtype=jnp.float32)
        pairing = jax.random.randint(k2, (n_pairs, 2), 0, 16, dtype=jnp.int32)
        X.append(PersistenceInformation(pairing=pairing, diagram=diagram, dimension=dim))

    # Run the kernel once explicitly and block on the result.
    dims = jnp.asarray(dimensions, dtype=jnp.int32)
    mask_range = jax.block_until_ready(select_mask(dims, 1, 2))
    mask_exact = jax.block_until_ready(select_mask(dims, 0, None))
    assert [int(v) for v in jax.device_get(mask_range)] == [0, 1, 1, 0, 1, 1, 0, 1]
    assert [int(v) for v in jax.device_get(mask_exact)] == [1, 0, 0, 1, 0, 0, 0, 0]

    # Case 1: range selection [1, 2]
    sel_range = SelectByDimension(min_dim=1, max_dim=2)
    out_range = sel_range(X)
    ref_range = [pi for pi in X if 1 <= pi.dimension <= 2]

    # Case 2: exact-dimension selection (max_dim=None)
    sel_exact = SelectByDimension(min_dim=0)
    out_exact = sel_exact(X)
    ref_exact = [pi for pi in X if 0 == pi.dimension]

    ok = (
        len(out_range) == len(ref_range)
        and all(o is r for o, r in zip(out_range, ref_range))
        and len(out_exact) == len(ref_exact)
        and all(o is r for o, r in zip(out_exact, ref_exact))
    )
    assert ok, "Pallas SelectByDimension mismatch vs. reference filter"

    print("KERNEL_OK")
</pallas_src>

<mosaic_0001>
module attributes {stable_mosaic.version = 11 : i64} {
  func.func @_select_mask_kernel(%arg0: i32, %arg1: memref<4xi32, #tpu.memory_space<smem>>, %arg2: memref<32x128xi32, #tpu.memory_space<vmem>>, %arg3: memref<32x128xi8, #tpu.memory_space<vmem>>) attributes {dimension_semantics = [#tpu.dimension_semantics<parallel>], iteration_bounds = array<i64: 1>, scalar_prefetch = 1 : i64, scratch_operands = 0 : i64, tpu.core_type = #tpu.core_type<tc>, window_params = [{transform_indices = @transform_0, window_bounds = array<i64: 32, 128>}, {transform_indices = @transform_1, window_bounds = array<i64: 32, 128>}]} {
    %c0 = arith.constant 0 : index
    %0 = memref.load %arg1[%c0] : memref<4xi32, #tpu.memory_space<smem>>
    %c1 = arith.constant 1 : index
    %1 = memref.load %arg1[%c1] : memref<4xi32, #tpu.memory_space<smem>>
    %c2 = arith.constant 2 : index
    %2 = memref.load %arg1[%c2] : memref<4xi32, #tpu.memory_space<smem>>
    %c3 = arith.constant 3 : index
    %3 = memref.load %arg1[%c3] : memref<4xi32, #tpu.memory_space<smem>>
    %c0_i32 = arith.constant 0 : i32
    %4 = arith.cmpi ne, %3, %c0_i32 : i32
    %5 = arith.select %4, %2, %1 : i32
    %c0_0 = arith.constant 0 : index
    %c0_1 = arith.constant 0 : index
    %6 = vector.load %arg2[%c0_0, %c0_1] : memref<32x128xi32, #tpu.memory_space<vmem>>, vector<32x128xi32>
    %c32_i32 = arith.constant 32 : i32
    %7 = arith.muli %arg0, %c32_i32 : i32
    %8 = tpu.iota {dimensions = array<i32: 0>} : vector<32x128xi32>
    %9 = vector.broadcast %7 : i32 to vector<32x128xi32>
    %10 = arith.addi %8, %9 : vector<32x128xi32>
    %11 = tpu.iota {dimensions = array<i32: 1>} : vector<32x128xi32>
    %c128_i32 = arith.constant 128 : i32
    %12 = vector.broadcast %c128_i32 : i32 to vector<32x128xi32>
    %13 = arith.muli %10, %12 : vector<32x128xi32>
    %14 = arith.addi %13, %11 : vector<32x128xi32>
    %15 = vector.broadcast %0 : i32 to vector<32x128xi32>
    %16 = arith.cmpi slt, %14, %15 : vector<32x128xi32>
    %17 = vector.broadcast %1 : i32 to vector<32x128xi32>
    %18 = arith.cmpi sge, %6, %17 : vector<32x128xi32>
    %19 = vector.broadcast %5 : i32 to vector<32x128xi32>
    %20 = arith.cmpi sle, %6, %19 : vector<32x128xi32>
    %21 = arith.andi %18, %20 : vector<32x128xi1>
    %22 = arith.andi %21, %16 : vector<32x128xi1>
    %23 = arith.extui %22 : vector<32x128xi1> to vector<32x128xi8>
    %c0_2 = arith.constant 0 : index
    %c0_3 = arith.constant 0 : index
    %24 = vector.load %arg3[%c0_2, %c0_3] : memref<32x128xi8, #tpu.memory_space<vmem>>, vector<32x128xi8>
    tpu.vector_store %arg3[%c0_2, %c0_3], %23 {strides = array<i32>} : memref<32x128xi8, #tpu.memory_space<vmem>>, vector<32x128xi8>,
    return
  }
  func.func @transform_0(%arg0: i32, %arg1: memref<4xi32, #tpu.memory_space<smem>>) -> (i32, i32) {
    %c0_i32 = arith.constant 0 : i32
    %c0_i32_0 = arith.constant 0 : i32
    return %arg0, %c0_i32 : i32, i32
  }
  func.func @transform_1(%arg0: i32, %arg1: memref<4xi32, #tpu.memory_space<smem>>) -> (i32, i32) {
    %c0_i32 = arith.constant 0 : i32
    %c0_i32_0 = arith.constant 0 : i32
    return %arg0, %c0_i32 : i32, i32
  }
}

</mosaic_0001>

<llo_original>
// kernel: _select_mask_call.1
$region0: #{_select_mask_call.1}
  #allocation0 [shape = 'u32[]', space=smem, size = 0x4, offset = 0x4, fixed_abs, tag = 'smem constant byte address 0x4 - core index']
  #allocation1 [shape = 'u32[72,128]{1,0:T(1,128)}', space=vmem, size = 0x9000, scoped, tag = 'internal scratch']
  #allocation2 [shape = 's32[1]{0}', space=sflag, size = 0x4, scoped, tag = 'scoped memory for _select_mask_call.1']
  #allocation3 [shape = 'u8[512]{0}', space=smem, size = 0x200, scoped, tag = 'prefetched SMEM operand 0']
  %s0 = inlined_call_operand.hbm [shape: s32[4], index: 0, kind: input, shape index: {}]
  %s1 = inlined_call_operand.hbm [shape: s32[32,128], index: 1, kind: input, shape index: {}]
  %s2 = inlined_call_operand.hbm [shape: s8[32,128], index: 2, kind: output, shape index: {}]
  %s3 = sld [smem:[#allocation0]]
  $region18: #{_select_mask_call.1} parent=0
    _
  %s5 = ssub.s32 1, %s3
  %s6 = scalar_select 0, %s5, %s3
  %s8 = sshll.u32 %s0, 4
  %s9 = int_to_ptr.hbm [resolvable:$true] %s8
  %11 = dma.hbm_to_smem %s9, 16, [#allocation3], [#allocation2]
  %13 = dma.done [#allocation2], 16
  %14 = sfence
  $region1: #{_select_mask_call.1} parent=0
    #allocation4 [shape = 'u8[16384]{0}', space=vmem, size = 0x4000, scoped, tag = 'input window, operand 1, single buffered']
    #allocation5 [shape = 's32[1]{0}', space=sflag, size = 0x4, scoped, tag = 'scoped memory for _select_mask_call.1']
    #allocation6 [shape = 's32[1]{0}', space=sflag, size = 0x4, scoped, tag = 'scoped memory for _select_mask_call.1']
    #allocation7 [shape = 'u8[4096]{0}', space=vmem, size = 0x1000, scoped, tag = 'output window, operand 0, single buffered']
    %15 = vsyncpa [#allocation5], 0
    %16 = vsyncpa [#allocation6], 0
    // Predicated region
    $region2: #{_select_mask_call.1} parent=1 // pred_check
      _
    $region3: #{_select_mask_call.1} parent=1 // pred_check_branch
      %18 = sbr.rel (0) target = $region5
    $region4: #{_select_mask_call.1} parent=1 // pred_region
      %20 = vsyncadd [#allocation5], 0
      %s21 = sshll.u32 %s1, 4
      %s22 = int_to_ptr.hbm [resolvable:$true] %s21
      %s23 = sshll.u32 [#allocation4], 4
      %s24 = int_to_ptr.vmem [resolvable:$true] %s23
      %29 = dma.hbm_to_vmem [thread:$0]  %s22, 512, %s24, [#allocation5], 128, 128, 8
    $region5: #{_select_mask_call.1} parent=1 // pred_fallthru
      _
    // Predicated region
    $region6: #{_select_mask_call.1} parent=1 // pred_check
      _
    $region7: #{_select_mask_call.1} parent=1 // pred_check_branch
      %31 = sbr.rel (0) target = $region9
    $region8: #{_select_mask_call.1} parent=1 // pred_region
      %33 = dma.done [#allocation5], 512
    $region9: #{_select_mask_call.1} parent=1 // pred_fallthru
      _
    %s36 = sld [smem:[#allocation3]]
    %s37 = sld [smem:[#allocation3 + $0x1]]
    %s38 = sld [smem:[#allocation3 + $0x2]]
    %s39 = sld [smem:[#allocation3 + $0x3]]
    %p40 = scmp.ne.s32.totalorder %s39, 0
    %s41 = scalar_select %p40, %s38, %s37
    %v42 = vld [vmem:[#allocation4] sm:$0xff]
    %v43 = vld [vmem:[#allocation4 + $0x8] sm:$0xff]
    %v44 = vld [vmem:[#allocation4 + $0x10] sm:$0xff]
    %v45 = vld [vmem:[#allocation4 + $0x18] sm:$0xff]
    %s46 = smul.u32 0, 32
    %v47 = vlaneseq
    %v48 = vshrl.u32 %v47, 7
    %v49 = vadd.s32 %v48, 8
    %v50 = vadd.s32 %v48, 16
    %v51 = vadd.s32 %v48, 24
    %v52 = vstv %s46
    %v53 = vadd.s32 %v48, %v52
    %v54 = vadd.s32 %v49, %v52
    %v55 = vadd.s32 %v50, %v52
    %v56 = vadd.s32 %v51, %v52
    %v57 = vlaneseq
    %v58 = vand.u32 %v57, 127
    %v59 = vmul.u32 %v53, 128
    %v60 = vmul.u32 %v54, 128
    %v61 = vmul.u32 %v55, 128
    %v62 = vmul.u32 %v56, 128
    %v63 = vadd.s32 %v59, %v58
    %v64 = vadd.s32 %v60, %v58
    %v65 = vadd.s32 %v61, %v58
    %v66 = vadd.s32 %v62, %v58
    %v67 = vstv %s36
    %vm68 = vcmp.lt.s32.totalorder %v63, %v67
    %vm69 = vcmp.lt.s32.totalorder %v64, %v67
    %vm70 = vcmp.lt.s32.totalorder %v65, %v67
    %vm71 = vcmp.lt.s32.totalorder %v66, %v67
    %v72 = vstv %s37
    %vm73 = vcmp.ge.s32.totalorder %v42, %v72
    %vm74 = vcmp.ge.s32.totalorder %v43, %v72
    %vm75 = vcmp.ge.s32.totalorder %v44, %v72
    %vm76 = vcmp.ge.s32.totalorder %v45, %v72
    %v77 = vstv %s41
    %vm78 = vcmp.le.s32.totalorder %v42, %v77
    %vm79 = vcmp.le.s32.totalorder %v43, %v77
    %vm80 = vcmp.le.s32.totalorder %v44, %v77
    %vm81 = vcmp.le.s32.totalorder %v45, %v77
    %vm82 = vmand %vm73, %vm78
    %vm83 = vmand %vm74, %vm79
    %vm84 = vmand %vm75, %vm80
    %vm85 = vmand %vm76, %vm81
    %vm86 = vmand %vm82, %vm68
    %vm87 = vmand %vm83, %vm69
    %vm88 = vmand %vm84, %vm70
    %vm89 = vmand %vm85, %vm71
    %vm90 = vmpackc.low %vm87, %vm86
    %vm91 = vmpackc.low %vm89, %vm88
    %v92 = vsel %vm90, 16711935, 0
    %v93 = vsel %vm91, 16711935, 0
    %v94 = vpack.c.b8 %v93, %v92
    %vm95 = vnez %v94
    %v96 = vsel %vm95, 16843009, 0
    %97 = vst [vmem:[#allocation7] sm:$0xff] %v96
    // Predicated region
    $region10: #{_select_mask_call.1} parent=1 // pred_check
      _
    $region11: #{_select_mask_call.1} parent=1 // pred_check_branch
      %99 = sbr.rel (0) target = $region13
    $region12: #{_select_mask_call.1} parent=1 // pred_region
      %101 = vsyncadd [#allocation6], 0
      %s103 = sshll.u32 [#allocation7], 4
      %s104 = int_to_ptr.vmem [resolvable:$true] %s103
      %s105 = sshll.u32 %s2, 4
      %s106 = int_to_ptr.hbm [resolvable:$true] %s105
      %108 = dma.vmem_to_hbm [thread:$0]  %s104, 128, %s106, [#allocation6]
    $region13: #{_select_mask_call.1} parent=1 // pred_fallthru
      _
    // Predicated region
    $region14: #{_select_mask_call.1} parent=1 // pred_check
      _
    $region15: #{_select_mask_call.1} parent=1 // pred_check_branch
      %110 = sbr.rel (0) target = $region17
    $region16: #{_select_mask_call.1} parent=1 // pred_region
      %112 = dma.done [#allocation6], 128
    $region17: #{_select_mask_call.1} parent=1 // pred_fallthru
      _
    %113 = vsyncpa [#allocation5], 1
    %114 = vsyncpa [#allocation6], 1

</llo_original>
